<compile_context>
chip_gen: v5e
topology: v5e:2x2
jax: 0.10.0
libtpu: 0.0.40
codegen_flags: <defaults>
</compile_context>

<pallas_src>
import functools
import math

import jax
import jax.numpy as jnp
from jax import lax
from jax.experimental import pallas as pl
from jax.experimental.pallas import tpu as pltpu

EPS = 1e-8                                   # asteroid PairwiseNegSDR epsilon
_NEG10_OVER_LN10 = -10.0 / math.log(10.0)    # -10*log10(x) == _NEG10_OVER_LN10 * ln(x)
_LANE = 128


# ----------------------------------------------------------------------------- kernels
def _stats_kernel(est_ref, tgt_ref, m_ref, *, precision):
    """Streamed sufficient statistics: M[b] += A[b] @ A[b]^T with A = [tgt; est; ones]."""
    t_idx = pl.program_id(1)

    @pl.when(t_idx == 0)
    def _init():
        m_ref[...] = jnp.zeros_like(m_ref)

    tgt = tgt_ref[...]                                       # (bt, n, tt) native dtype
    est = est_ref[...]
    ones_row = jnp.ones((tgt.shape[0], 1, tgt.shape[2]), tgt.dtype)
    a = jnp.concatenate([tgt, est, ones_row], axis=1)        # (bt, 2n+1, tt)
    # One MXU stream per sample; accumulate in f32 in the VMEM-resident output block.
    m_ref[...] += jnp.einsum("bit,bjt->bij", a, a,
                             preferred_element_type=jnp.float32,
                             precision=precision)


def _sinkhorn_kernel(mp_ref, out_ref, *, beta, n_iter, n_src, inv_t):
    """Pairwise neg-SI-SDR from the stats + whole-batch Sinkhorn, lane-dense layout."""
    n = n_src
    mp = mp_ref[...]                                         # (2n+1, 2n+1, B) f32
    eye = jnp.eye(n, dtype=jnp.float32)[:, :, None]          # (n, n, 1)

    g = mp[0:n, n:2 * n, :]                                  # <tgt_i, est_j>   (n, n, B)
    st = mp[0:n, 2 * n:2 * n + 1, :]                         # sum_t tgt_i      (n, 1, B)
    se = mp[2 * n:2 * n + 1, n:2 * n, :]                     # sum_t est_j      (1, n, B)
    sqt = jnp.sum(mp[0:n, 0:n, :] * eye, axis=1, keepdims=True)          # ||tgt_i||^2
    sqe = jnp.sum(mp[n:2 * n, n:2 * n, :] * eye, axis=0, keepdims=True)  # ||est_j||^2

    # zero-mean folded in algebraically (true T used; zero time-padding is inert).
    # TODO(synk): for very long / strongly DC-offset clips a compensated (Kahan) or
    # per-tile-centered accumulation would be more robust than this one-pass centering.
    gc = g - (st * se) * inv_t
    te = jnp.maximum(sqt - st * st * inv_t, 0.0)             # centered ||tgt||^2
    ee = jnp.maximum(sqe - se * se * inv_t, 0.0)             # centered ||est||^2

    s_energy = te + EPS                                      # asteroid: ||t||^2 + EPS
    g2 = gc * gc
    proj_e = g2 * te / (s_energy * s_energy)                 # ||proj||^2
    noise_e = jnp.maximum(ee - 2.0 * g2 / s_energy + proj_e, 0.0)
    sdr = proj_e / (noise_e + EPS)
    # c[i, j, b] == torch C[b, tgt_i, est_j] = -10*log10(SI-SDR(est_j, tgt_i))
    c = _NEG10_OVER_LN10 * jnp.log(sdr + EPS)                # (n, n, B)

    z0 = -beta * c

    def _lse(z, axis):
        m = jnp.max(z, axis=axis, keepdims=True)
        return m + jnp.log(jnp.sum(jnp.exp(z - m), axis=axis, keepdims=True))

    def body(_, z):
        z = z - _lse(z, 0)     # torch logsumexp(axis=1): reduce over tgt index
        z = z - _lse(z, 1)     # torch logsumexp(axis=2): reduce over est index
        return z

    z = lax.fori_loop(0, n_iter // 2, body, z0, unroll=4)

    # min_loss_b = einsum('ij,ij->', C + Z/beta, exp(Z)) / n_src   (packed over lanes)
    s = (c + z * (1.0 / beta)) * jnp.exp(z)                  # (n, n, B)
    per_sample = jnp.sum(jnp.sum(s, axis=0), axis=0, keepdims=True) * (1.0 / n_src)
    out_ref[...] = per_sample.astype(out_ref.dtype)          # (1, B), lane-dense


# ------------------------------------------------------------------------------ tiling
def _vmem_config():
    """(vmem_limit_bytes, input-buffer budget) — generation aware, conservative fallback."""
    phys = None
    try:
        phys = int(getattr(pltpu.get_tpu_info(), "vmem_capacity_bytes", 0)) or None
    except Exception:
        phys = None
    if phys is not None and phys >= 128 * 1024 * 1024:       # v5e / v6e: 128 MiB physical
        return 64 * 1024 * 1024, 40 * 1024 * 1024
    # v7x (64 MiB physical, 32 MiB default scoped) or unknown: stay conservative.
    return 32 * 1024 * 1024, 18 * 1024 * 1024


def _choose_tiles(B, n_src, T, itemsize, budget, bt=None, t_tile=None):
    if bt is None:
        # Largest divisor of B, capped at 32 and at B//2 so the "parallel" batch axis
        # keeps >= 2 blocks (both v7x TensorCores get work); harmless on v5e/v6e.
        cap = max(1, min(32, B // 2)) if B >= 2 else 1
        bt = 1
        for cand in range(cap, 0, -1):
            if B % cand == 0:
                bt = cand
                break
    assert B % bt == 0, f"batch tile {bt} must divide batch {B}"

    if t_tile is None:
        # VMEM accounting with sublane padding: each (bt, n, t) input block occupies
        # bt * round_up(n,8) * t * itemsize; 2 inputs x 2 pipeline buffers, plus one
        # concat temp of round_up(2n+1,8) sublanes.  No artificial lane cap.
        n_pad = 8 * ((n_src + 7) // 8)
        a_pad = 8 * ((2 * n_src + 1 + 7) // 8)
        bytes_per_lane = (4 * n_pad + a_pad) * bt * itemsize
        max_t = (budget // bytes_per_lane // _LANE) * _LANE
        t_full = -(-T // _LANE) * _LANE
        t_tile = max(_LANE, min(t_full, max_t))
    assert t_tile % _LANE == 0, "time tile must be a multiple of 128"
    return bt, t_tile


# ----------------------------------------------------------------------------- wrapper
def sinkpit_loss(est_targets, targets, beta=10.0, n_iter=200, *,
                 bt=None, t_tile=None, mxu_precision=None):
    """Forward pass of SinkPITLossWrapper(pairwise_neg_sisdr) in training mode."""
    assert est_targets.shape == targets.shape
    assert n_iter % 2 == 0, "n_iter is supposed to be an even number"
    B, n_src, T = targets.shape
    assert n_src < 100, f"Expected source axis along dim 1, found {n_src}"
    aug = 2 * n_src + 1

    vmem_limit, budget = _vmem_config()
    itemsize = jnp.dtype(targets.dtype).itemsize
    bt, t_tile = _choose_tiles(B, n_src, T, itemsize, budget, bt=bt, t_tile=t_tile)
    n_t = -(-T // t_tile)
    t_padded = n_t * t_tile
    if t_padded != T:
        # Zero padding is exact: padded samples add nothing to any product we use (only
        # the unused ones.ones count entry changes) and the finalize uses the true T.
        pad = ((0, 0), (0, 0), (0, t_padded - T))
        est_targets = jnp.pad(est_targets, pad)
        targets = jnp.pad(targets, pad)

    # Pass 1: streamed sufficient statistics (pure reduction over the time axis).
    stats = pl.pallas_call(
        functools.partial(_stats_kernel, precision=mxu_precision),
        out_shape=jax.ShapeDtypeStruct((B, aug, aug), jnp.float32),
        grid=(B // bt, n_t),
        in_specs=[
            pl.BlockSpec((bt, n_src, t_tile), lambda b, t: (b, 0, t)),
            pl.BlockSpec((bt, n_src, t_tile), lambda b, t: (b, 0, t)),
        ],
        out_specs=pl.BlockSpec((bt, aug, aug), lambda b, t: (b, 0, 0)),
        compiler_params=pltpu.CompilerParams(
            dimension_semantics=("parallel", "arbitrary"),
            vmem_limit_bytes=vmem_limit,
        ),
    )(est_targets, targets)

    # Tiny XLA relayout (B*aug*aug floats) so pass 2 sees the batch on the lane axis.
    stats_packed = jnp.transpose(stats, (1, 2, 0))           # (aug, aug, B)

    # Pass 2: finalize + whole-batch Sinkhorn on a single lane-dense block.
    per_sample = pl.pallas_call(
        functools.partial(_sinkhorn_kernel, beta=float(beta), n_iter=int(n_iter),
                          n_src=n_src, inv_t=1.0 / float(T)),
        out_shape=jax.ShapeDtypeStruct((1, B), jnp.float32),
    )(stats_packed)

    return jnp.mean(per_sample)                              # batch mean (glue)


class SinkPITLossWrapper:
    """Minimal JAX/Pallas port of asteroid's SinkPITLossWrapper (training path)."""

    def __init__(self, n_iter=200, hungarian_validation=True):
        self._beta = 10.0            # deterministic init, matches the torch module
        self.n_iter = n_iter
        self.hungarian_validation = hungarian_validation
        self.training = True

    @property
    def beta(self):
        return self._beta

    @beta.setter
    def beta(self, beta):
        assert beta > 0
        self._beta = beta

    def __call__(self, est_targets, targets, return_est=False):
        if return_est or (not self.training and self.hungarian_validation):
            # TODO(synk): Hungarian find_best_perm / reorder_source (exact assignment)
            # has no clean Pallas equivalent; only the Sinkhorn training path is ported.
            raise NotImplementedError
        return sinkpit_loss(est_targets, targets, beta=self._beta, n_iter=self.n_iter)


# --------------------------------------------------------------------------- reference
def _reference_loss(est, tgt, beta=10.0, n_iter=200):
    """Pure-JAX reference mirroring the PyTorch code (for a sanity check)."""
    est = est - jnp.mean(est, axis=-1, keepdims=True)
    tgt = tgt - jnp.mean(tgt, axis=-1, keepdims=True)
    s_target = tgt[:, None, :, :]      # (B, 1, n, T)
    s_estimate = est[:, :, None, :]    # (B, n, 1, T)
    dot = jnp.sum(s_estimate * s_target, axis=-1, keepdims=True)
    energy = jnp.sum(s_target ** 2, axis=-1, keepdims=True) + EPS
    proj = dot * s_target / energy
    e_noise = s_estimate - proj
    sdr = jnp.sum(proj ** 2, axis=-1) / (jnp.sum(e_noise ** 2, axis=-1) + EPS)
    pw = -10.0 * jnp.log10(sdr + EPS)              # (B, n_est, n_tgt)
    C = jnp.swapaxes(pw, -1, -2)
    n_src = C.shape[-1]
    Z = -beta * C
    for _ in range(n_iter // 2):
        Z = Z - jax.scipy.special.logsumexp(Z, axis=1, keepdims=True)
        Z = Z - jax.scipy.special.logsumexp(Z, axis=2, keepdims=True)
    min_loss = jnp.einsum("bij,bij->b", C + Z / beta, jnp.exp(Z)) / n_src
    return jnp.mean(min_loss)


if __name__ == "__main__":
    key = jax.random.PRNGKey(0)

    # Check 1: streamed time axis + multiple batch blocks (bt=2, t_tile=128 -> grid (2, 4))
    # plus the packed whole-batch Sinkhorn (B=4 on the lane axis).
    B, n_src, T = 4, 3, 512
    k1, k2 = jax.random.split(key)
    est_targets = jax.random.normal(k1, (B, n_src, T), dtype=jnp.float32)
    targets = jax.random.normal(k2, (B, n_src, T), dtype=jnp.float32)

    loss_wrapper = SinkPITLossWrapper(n_iter=200)
    loss = jax.block_until_ready(
        sinkpit_loss(est_targets, targets, beta=loss_wrapper.beta,
                     n_iter=loss_wrapper.n_iter, bt=2, t_tile=128))
    ref = jax.block_until_ready(_reference_loss(est_targets, targets))
    assert jnp.isfinite(loss), "kernel produced non-finite loss"
    assert jnp.allclose(loss, ref, rtol=1e-2, atol=1e-3), (loss, ref)

    # Check 2: module wrapper with auto tiling and the T zero-padding path (T=200 -> 256).
    B2, n2, T2 = 2, 2, 200
    k3, k4 = jax.random.split(k1)
    est2 = jax.random.normal(k3, (B2, n2, T2), dtype=jnp.float32)
    tgt2 = jax.random.normal(k4, (B2, n2, T2), dtype=jnp.float32)
    loss2 = jax.block_until_ready(loss_wrapper(est2, tgt2))
    ref2 = jax.block_until_ready(_reference_loss(est2, tgt2))
    assert jnp.isfinite(loss2), "kernel produced non-finite loss"
    assert jnp.allclose(loss2, ref2, rtol=1e-2, atol=1e-3), (loss2, ref2)

    print("KERNEL_OK")
</pallas_src>

<mosaic_0001>
module attributes {stable_mosaic.version = 11 : i64} {
  func.func @_stats_kernel(%arg0: i32, %arg1: i32, %arg2: memref<2x3x128xf32, #tpu.memory_space<vmem>>, %arg3: memref<2x3x128xf32, #tpu.memory_space<vmem>>, %arg4: memref<2x7x7xf32, #tpu.memory_space<vmem>>) attributes {dimension_semantics = [#tpu.dimension_semantics<parallel>, #tpu.dimension_semantics<arbitrary>], iteration_bounds = array<i64: 2, 4>, scalar_prefetch = 0 : i64, scratch_operands = 0 : i64, tpu.core_type = #tpu.core_type<tc>, window_params = [{transform_indices = @transform_0, window_bounds = array<i64: 2, 3, 128>}, {transform_indices = @transform_1, window_bounds = array<i64: 2, 3, 128>}, {transform_indices = @transform_2, window_bounds = array<i64: 2, 7, 7>}]} {
    %c0_i32 = arith.constant 0 : i32
    %0 = arith.cmpi eq, %arg1, %c0_i32 : i32
    %1 = arith.extui %0 : i1 to i32
    %c0_i32_0 = arith.constant 0 : i32
    %2 = arith.cmpi ne, %1, %c0_i32_0 : i32
    scf.if %2 {
      %cst_13 = arith.constant 0.000000e+00 : f32
      %11 = vector.broadcast %cst_13 : f32 to vector<2x7x7xf32>
      %c0_14 = arith.constant 0 : index
      %c0_15 = arith.constant 0 : index
      %c0_16 = arith.constant 0 : index
      %12 = vector.load %arg4[%c0_14, %c0_15, %c0_16] : memref<2x7x7xf32, #tpu.memory_space<vmem>>, vector<2x7x7xf32>
      tpu.vector_store %arg4[%c0_14, %c0_15, %c0_16], %11 {strides = array<i32>} : memref<2x7x7xf32, #tpu.memory_space<vmem>>, vector<2x7x7xf32>,
    } else {
    }
    %c0 = arith.constant 0 : index
    %c0_1 = arith.constant 0 : index
    %c0_2 = arith.constant 0 : index
    %3 = vector.load %arg3[%c0, %c0_1, %c0_2] : memref<2x3x128xf32, #tpu.memory_space<vmem>>, vector<2x3x128xf32>
    %c0_3 = arith.constant 0 : index
    %c0_4 = arith.constant 0 : index
    %c0_5 = arith.constant 0 : index
    %4 = vector.load %arg2[%c0_3, %c0_4, %c0_5] : memref<2x3x128xf32, #tpu.memory_space<vmem>>, vector<2x3x128xf32>
    %cst = arith.constant 1.000000e+00 : f32
    %5 = vector.broadcast %cst : f32 to vector<2x1x128xf32>
    %6 = tpu.concatenate %3, %4, %5 in 1 : vector<2x3x128xf32>, vector<2x3x128xf32>, vector<2x1x128xf32> -> vector<2x7x128xf32>
    %c0_6 = arith.constant 0 : index
    %c0_7 = arith.constant 0 : index
    %c0_8 = arith.constant 0 : index
    %7 = vector.load %arg4[%c0_6, %c0_7, %c0_8] : memref<2x7x7xf32, #tpu.memory_space<vmem>>, vector<2x7x7xf32>
    "tpu.trace_start"() <{level = 10 : i32, message = "bit,bjt->bij"}> : () -> ()
    %cst_9 = arith.constant dense<0.000000e+00> : vector<2x7x7xf32>
    %8 = tpu.matmul %6, %6, %cst_9 {dimension_numbers = #tpu.dot_dimension_numbers<[2], [2], [1], [1], [0, 0, 0, 1, 1, 1], [0], [0]>} : vector<2x7x128xf32>, vector<2x7x128xf32>, vector<2x7x7xf32> -> vector<2x7x7xf32>
    "tpu.trace_stop"() : () -> ()
    %9 = arith.addf %7, %8 : vector<2x7x7xf32>
    %c0_10 = arith.constant 0 : index
    %c0_11 = arith.constant 0 : index
    %c0_12 = arith.constant 0 : index
    %10 = vector.load %arg4[%c0_10, %c0_11, %c0_12] : memref<2x7x7xf32, #tpu.memory_space<vmem>>, vector<2x7x7xf32>
    tpu.vector_store %arg4[%c0_10, %c0_11, %c0_12], %9 {strides = array<i32>} : memref<2x7x7xf32, #tpu.memory_space<vmem>>, vector<2x7x7xf32>,
    return
  }
  func.func @transform_0(%arg0: i32, %arg1: i32) -> (i32, i32, i32) {
    %c0_i32 = arith.constant 0 : i32
    %c0_i32_0 = arith.constant 0 : i32
    return %arg0, %c0_i32, %arg1 : i32, i32, i32
  }
  func.func @transform_1(%arg0: i32, %arg1: i32) -> (i32, i32, i32) {
    %c0_i32 = arith.constant 0 : i32
    %c0_i32_0 = arith.constant 0 : i32
    return %arg0, %c0_i32, %arg1 : i32, i32, i32
  }
  func.func @transform_2(%arg0: i32, %arg1: i32) -> (i32, i32, i32) {
    %c0_i32 = arith.constant 0 : i32
    %c0_i32_0 = arith.constant 0 : i32
    %c0_i32_1 = arith.constant 0 : i32
    return %arg0, %c0_i32, %c0_i32_0 : i32, i32, i32
  }
}

</mosaic_0001>

<llo_original>
// kernel: tpu_custom_call.1
$region0: #{tpu_custom_call.1}
  #allocation0 [shape = 'u32[]', space=smem, size = 0x4, offset = 0x4, fixed_abs, tag = 'smem constant byte address 0x4 - core index']
  #allocation1 [shape = 'u32[72,128]{1,0:T(1,128)}', space=vmem, size = 0x9000, scoped, tag = 'internal scratch']
  %s0 = inlined_call_operand.vmem [shape: f32[4,3,512], index: 0, kind: input, shape index: {}]
  %s1 = inlined_call_operand.vmem [shape: f32[4,3,512], index: 1, kind: input, shape index: {}]
  %s2 = inlined_call_operand.vmem [shape: f32[4,7,7], index: 2, kind: output, shape index: {}]
  %s3 = sld [smem:[#allocation0]]
  $region127: #{tpu_custom_call.1} parent=0
    _
  %s5 = ssub.s32 1, %s3
  %s6 = scalar_select 0, %s5, %s3
  $region1: #{tpu_custom_call.1} parent=0
    #allocation2 [shape = 'u8[8192]{0}', space=vmem, size = 0x2000, scoped, tag = 'input window, operand 0']
    #allocation3 [shape = 'u8[8192]{0}', space=vmem, size = 0x2000, scoped, tag = 'input window, operand 1']
    loop: start=0, step=1, limit=10
    $region2: #{tpu_custom_call.1} parent=1 // loop_pre_header
      _
    $region3: #{tpu_custom_call.1} parent=1 // loop_header
      %s8 = sphi 0, %s12
      %p9 = scmp.ge.s32.totalorder %s8, 10
      %s15 = sphi 0, %s27
      %s16 = sphi 0, %s23
      %s17 = sphi 0, %s15
      %s18 = sphi 0, %s16
      %s19 = sphi 0, %s17
      %s20 = sphi 0, %s18
      %s32 = sphi 0, %s34
      %s35 = sphi 0, %s32
      %s36 = sphi 0, %s35
      %s52 = sphi 0, %s36
      %s60 = sphi 0, %s62
      %s63 = sphi 0, %s60
      %s64 = sphi 0, %s63
      %s80 = sphi 0, %s64
      %s86 = sphi 0, %s88
      %s89 = sphi 0, %s86
      %s90 = sphi 0, %s89
      %s106 = sphi 0, %s90
    $region4: #{tpu_custom_call.1} parent=1 // loop_header_branch
      %11 = sbr.rel (%p9) target = $region8
    $region5: #{tpu_custom_call.1} parent=1 // loop_body
      %s13 = ssub.s32 %s8, 1
      %s14 = ssub.s32 %s8, 2
      %s21 = sadd.s32 1, %s16
      %p22 = scmp.ge.s32.totalorder %s21, 4
      %s23 = scalar_select %p22, 0, %s21
      %s24 = sadd.s32 1, %s15
      %s25 = scalar_select %p22, %s24, %s15
      %p26 = scmp.ge.s32.totalorder %s25, 2
      %s27 = scalar_select %p26, 0, %s25
      %s28 = ssub.s32 %s15, %s27
      %s29 = ssub.s32 %s16, %s23
      %s30 = sor.u32 %s28, %s29
      %p31 = scmp.eq.s32.totalorder %s30, 0
      %s33 = sadd.s32 %s32, 1
      %s34 = scalar_select %p31, %s32, %s33
      %p37 = pneg %p31
      %p38 = scmp.eq.s32.totalorder %s8, 7
      %p39 = por %p37, %p38
      %p40 = scmp.ne.s32.totalorder %s32, %s35
      %p41 = scmp.eq.s32.totalorder %s8, 0
      %p42 = por %p40, %p41
      %p43 = scmp.ne.s32.totalorder %s32, %s35
      %p44 = scmp.eq.s32.totalorder %s13, 7
      %p45 = por %p43, %p44
      %p46 = scmp.ne.s32.totalorder %s35, %s36
      %p47 = scmp.eq.s32.totalorder %s13, 0
      %p48 = por %p46, %p47
      %p49 = scmp.ne.s32.totalorder %s35, %s36
      %p50 = scmp.eq.s32.totalorder %s14, 7
      %p51 = por %p49, %p50
      %p53 = scmp.ne.s32.totalorder %s36, %s52
      %p54 = scmp.eq.s32.totalorder %s14, 0
      %p55 = por %p53, %p54
      %s56 = ssub.s32 %s15, %s27
      %s57 = ssub.s32 %s16, %s23
      %s58 = sor.u32 %s56, %s57
      %p59 = scmp.eq.s32.totalorder %s58, 0
      %s61 = sadd.s32 %s60, 1
      %s62 = scalar_select %p59, %s60, %s61
      %p65 = pneg %p59
      %p66 = scmp.eq.s32.totalorder %s8, 7
      %p67 = por %p65, %p66
      %p68 = scmp.ne.s32.totalorder %s60, %s63
      %p69 = scmp.eq.s32.totalorder %s8, 0
      %p70 = por %p68, %p69
      %p71 = scmp.ne.s32.totalorder %s60, %s63
      %p72 = scmp.eq.s32.totalorder %s13, 7
      %p73 = por %p71, %p72
      %p74 = scmp.ne.s32.totalorder %s63, %s64
      %p75 = scmp.eq.s32.totalorder %s13, 0
      %p76 = por %p74, %p75
      %p77 = scmp.ne.s32.totalorder %s63, %s64
      %p78 = scmp.eq.s32.totalorder %s14, 7
      %p79 = por %p77, %p78
      %p81 = scmp.ne.s32.totalorder %s64, %s80
      %p82 = scmp.eq.s32.totalorder %s14, 0
      %p83 = por %p81, %p82
      %s84 = ssub.s32 %s15, %s27
      %p85 = scmp.eq.s32.totalorder %s84, 0
      %s87 = sadd.s32 %s86, 1
      %s88 = scalar_select %p85, %s86, %s87
      %p91 = pneg %p85
      %p92 = scmp.eq.s32.totalorder %s8, 7
      %p93 = por %p91, %p92
      %p94 = scmp.ne.s32.totalorder %s86, %s89
      %p95 = scmp.eq.s32.totalorder %s8, 0
      %p96 = por %p94, %p95
      %p97 = scmp.ne.s32.totalorder %s86, %s89
      %p98 = scmp.eq.s32.totalorder %s13, 7
      %p99 = por %p97, %p98
      %p100 = scmp.ne.s32.totalorder %s89, %s90
      %p101 = scmp.eq.s32.totalorder %s13, 0
      %p102 = por %p100, %p101
      %p103 = scmp.ne.s32.totalorder %s89, %s90
      %p104 = scmp.eq.s32.totalorder %s14, 7
      %p105 = por %p103, %p104
      %p107 = scmp.ne.s32.totalorder %s90, %s106
      %p108 = scmp.eq.s32.totalorder %s14, 0
      %p109 = por %p107, %p108
      %p110 = scmp.le.s32.totalorder 1, %s8
      %p111 = scmp.lt.s32.totalorder %s8, 9
      %p112 = pnand %p110, %p111
      %p113 = pneg %p112
      // Predicated region
      $region9: #{tpu_custom_call.1} parent=5 // pred_check
        _
      $region10: #{tpu_custom_call.1} parent=5 // pred_check_branch
        %115 = sbr.rel (%p112) target = $region12
      $region11: #{tpu_custom_call.1} parent=5 // pred_region
        %s116 = ssub.s32 %s8, 1
      $region12: #{tpu_custom_call.1} parent=5 // pred_fallthru
        _
      %p117 = scmp.lt.s32.totalorder %s8, 8
      // Predicated region
      $region13: #{tpu_custom_call.1} parent=5 // pred_check
        %p118 = pneg %p117
      $region14: #{tpu_custom_call.1} parent=5 // pred_check_branch
        %120 = sbr.rel (%p118) target = $region16
      $region15: #{tpu_custom_call.1} parent=5 // pred_region
        // Predicated region
        $region17: #{tpu_custom_call.1} parent=15 // pred_check
          %p121 = pneg %p42
        $region18: #{tpu_custom_call.1} parent=15 // pred_check_branch
          %123 = sbr.rel (%p121) target = $region20
        $region19: #{tpu_custom_call.1} parent=15 // pred_region
          %s124 = sand.u32 %s32, 1
          %s125 = sand.u32 %s32, 1
          %s126 = smul.addr %s125, 8
          %s127 = scalar_lea.vmem [#allocation2], %s126
          %s128 = smul.u32 2, %s15
          %s129 = smul.addr %s128, 4
          %s130 = sadd.s32 %s16, %s129
          %s131 = smul.addr %s130, 4
          %s132 = scalar_lea.vmem %s0, %s131
          // Predicated region
          $region21: #{tpu_custom_call.1} parent=19 // pred_check
            _
          $region22: #{tpu_custom_call.1} parent=19 // pred_check_branch
            %134 = sbr.rel (0) target = $region24
          $region23: #{tpu_custom_call.1} parent=19 // pred_region
            // Predicated region
            $region25: #{tpu_custom_call.1} parent=23 // pred_check
              _
            $region26: #{tpu_custom_call.1} parent=23 // pred_check_branch
              %136 = sbr.rel target = $region28
            $region27: #{tpu_custom_call.1} parent=23 // pred_region
              // Predicated region
              $region40: #{tpu_custom_call.1} parent=27 // pred_check
                _
              $region41: #{tpu_custom_call.1} parent=27 // pred_check_branch
                %154 = sbr.rel (0) target = $region43
              $region42: #{tpu_custom_call.1} parent=27 // pred_region
                loop: start=0, step=1, limit=1
                $region44: #{tpu_custom_call.1} parent=42 // loop_pre_header
                  _
                $region45: #{tpu_custom_call.1} parent=42 // loop_header
                  %s156 = sphi 0, %s160
                  %p157 = scmp.ge.s32.totalorder %s156, 1
                  %s161 = sphi %s132, %s132
                  %s162 = sphi %s127, %s127
                $region46: #{tpu_custom_call.1} parent=42 // loop_header_branch
                  %159 = sbr.rel (%p157) target = $region50
                $region47: #{tpu_custom_call.1} parent=42 // loop_body
                  _
                $region48: #{tpu_custom_call.1} parent=42 // loop_footer
                  %s160 = sadd.s32 1, %s156
                $region49: #{tpu_custom_call.1} parent=42 // loop_footer_branch
                  %155 = sbr.rel target = $region45
                $region50: #{tpu_custom_call.1} parent=42 // loop_exit
                  _
                %s164 = ssub.s32 16, 1
                loop: start=0, step=1, limit=1
                $region51: #{tpu_custom_call.1} parent=42 // loop_pre_header
                  _
                $region52: #{tpu_custom_call.1} parent=42 // loop_header
                  %s166 = sphi 0, %s170
                  %p167 = scmp.ge.s32.totalorder %s166, 1
                  %s171 = sphi %s132, %s132
                  %s172 = sphi %s127, %s127
                $region53: #{tpu_custom_call.1} parent=42 // loop_header_branch
                  %169 = sbr.rel (%p167) target = $region57
                $region54: #{tpu_custom_call.1} parent=42 // loop_body
                  %v173 = vld [vmem:[%s171] sm:%s164]
                  %174 = vst [vmem:[%s172] sm:%s164] %v173
                  %v175 = vld [vmem:[%s171 + $0x10] sm:%s164]
                  %176 = vst [vmem:[%s172 + $0x4] sm:%s164] %v175
                $region55: #{tpu_custom_call.1} parent=42 // loop_footer
                  %s170 = sadd.s32 1, %s166
                $region56: #{tpu_custom_call.1} parent=42 // loop_footer_branch
                  %165 = sbr.rel target = $region52
                $region57: #{tpu_custom_call.1} parent=42 // loop_exit
                  _
              $region43: #{tpu_custom_call.1} parent=27 // pred_fallthru
                _
            $region28: #{tpu_custom_call.1} parent=23 // pred_fallthru
              _
            // Predicated region
            $region29: #{tpu_custom_call.1} parent=23 // pred_check
              _
            $region30: #{tpu_custom_call.1} parent=23 // pred_check_branch
              %138 = sbr.rel (0) target = $region32
            $region31: #{tpu_custom_call.1} parent=23 // pred_region
              %s140 = ssub.s32 16, 1
              loop: start=0, step=1, limit=1
              $region33: #{tpu_custom_call.1} parent=31 // loop_pre_header
                _
              $region34: #{tpu_custom_call.1} parent=31 // loop_header
                %s142 = sphi 0, %s146
                %p143 = scmp.ge.s32.totalorder %s142, 1
                %s147 = sphi %s132, %s132
                %s148 = sphi %s127, %s127
              $region35: #{tpu_custom_call.1} parent=31 // loop_header_branch
                %145 = sbr.rel (%p143) target = $region39
              $region36: #{tpu_custom_call.1} parent=31 // loop_body
                %v149 = vld [vmem:[%s147] sm:%s140]
                %150 = vst [vmem:[%s148] sm:%s140] %v149
                %v151 = vld [vmem:[%s147 + $0x10] sm:%s140]
                %152 = vst [vmem:[%s148 + $0x4] sm:%s140] %v151
              $region37: #{tpu_custom_call.1} parent=31 // loop_footer
                %s146 = sadd.s32 1, %s142
              $region38: #{tpu_custom_call.1} parent=31 // loop_footer_branch
                %141 = sbr.rel target = $region34
              $region39: #{tpu_custom_call.1} parent=31 // loop_exit
                _
            $region32: #{tpu_custom_call.1} parent=23 // pred_fallthru
              _
          $region24: #{tpu_custom_call.1} parent=19 // pred_fallthru
            _
          %177 = vnop
        $region20: #{tpu_custom_call.1} parent=15 // pred_fallthru
          _
        // Predicated region
        $region58: #{tpu_custom_call.1} parent=15 // pred_check
          %p178 = pneg %p70
        $region59: #{tpu_custom_call.1} parent=15 // pred_check_branch
          %180 = sbr.rel (%p178) target = $region61
        $region60: #{tpu_custom_call.1} parent=15 // pred_region
          %s181 = sand.u32 %s60, 1
          %s182 = sand.u32 %s60, 1
          %s183 = smul.addr %s182, 8
          %s184 = scalar_lea.vmem [#allocation3], %s183
          %s185 = smul.u32 2, %s15
          %s186 = smul.addr %s185, 4
          %s187 = sadd.s32 %s16, %s186
          %s188 = smul.addr %s187, 4
          %s189 = scalar_lea.vmem %s1, %s188
          // Predicated region
          $region62: #{tpu_custom_call.1} parent=60 // pred_check
            _
          $region63: #{tpu_custom_call.1} parent=60 // pred_check_branch
            %191 = sbr.rel (0) target = $region65
          $region64: #{tpu_custom_call.1} parent=60 // pred_region
            // Predicated region
            $region66: #{tpu_custom_call.1} parent=64 // pred_check
              _
            $region67: #{tpu_custom_call.1} parent=64 // pred_check_branch
              %193 = sbr.rel target = $region69
            $region68: #{tpu_custom_call.1} parent=64 // pred_region
              // Predicated region
              $region81: #{tpu_custom_call.1} parent=68 // pred_check
                _
              $region82: #{tpu_custom_call.1} parent=68 // pred_check_branch
                %211 = sbr.rel (0) target = $region84
              $region83: #{tpu_custom_call.1} parent=68 // pred_region
                loop: start=0, step=1, limit=1
                $region85: #{tpu_custom_call.1} parent=83 // loop_pre_header
                  _
                $region86: #{tpu_custom_call.1} parent=83 // loop_header
                  %s213 = sphi 0, %s217
                  %p214 = scmp.ge.s32.totalorder %s213, 1
                  %s218 = sphi %s189, %s189
                  %s219 = sphi %s184, %s184
                $region87: #{tpu_custom_call.1} parent=83 // loop_header_branch
                  %216 = sbr.rel (%p214) target = $region91
                $region88: #{tpu_custom_call.1} parent=83 // loop_body
                  _
                $region89: #{tpu_custom_call.1} parent=83 // loop_footer
                  %s217 = sadd.s32 1, %s213
                $region90: #{tpu_custom_call.1} parent=83 // loop_footer_branch
                  %212 = sbr.rel target = $region86
                $region91: #{tpu_custom_call.1} parent=83 // loop_exit
                  _
                %s221 = ssub.s32 16, 1
                loop: start=0, step=1, limit=1
                $region92: #{tpu_custom_call.1} parent=83 // loop_pre_header
                  _
                $region93: #{tpu_custom_call.1} parent=83 // loop_header
                  %s223 = sphi 0, %s227
                  %p224 = scmp.ge.s32.totalorder %s223, 1
                  %s228 = sphi %s189, %s189
                  %s229 = sphi %s184, %s184
                $region94: #{tpu_custom_call.1} parent=83 // loop_header_branch
                  %226 = sbr.rel (%p224) target = $region98
                $region95: #{tpu_custom_call.1} parent=83 // loop_body
                  %v230 = vld [vmem:[%s228] sm:%s221]
                  %231 = vst [vmem:[%s229] sm:%s221] %v230
                  %v232 = vld [vmem:[%s228 + $0x10] sm:%s221]
                  %233 = vst [vmem:[%s229 + $0x4] sm:%s221] %v232
                $region96: #{tpu_custom_call.1} parent=83 // loop_footer
                  %s227 = sadd.s32 1, %s223
                $region97: #{tpu_custom_call.1} parent=83 // loop_footer_branch
                  %222 = sbr.rel target = $region93
                $region98: #{tpu_custom_call.1} parent=83 // loop_exit
                  _
              $region84: #{tpu_custom_call.1} parent=68 // pred_fallthru
                _
            $region69: #{tpu_custom_call.1} parent=64 // pred_fallthru
              _
            // Predicated region
            $region70: #{tpu_custom_call.1} parent=64 // pred_check
              _
            $region71: #{tpu_custom_call.1} parent=64 // pred_check_branch
              %195 = sbr.rel (0) target = $region73
            $region72: #{tpu_custom_call.1} parent=64 // pred_region
              %s197 = ssub.s32 16, 1
              loop: start=0, step=1, limit=1
              $region74: #{tpu_custom_call.1} parent=72 // loop_pre_header
                _
              $region75: #{tpu_custom_call.1} parent=72 // loop_header
                %s199 = sphi 0, %s203
                %p200 = scmp.ge.s32.totalorder %s199, 1
                %s204 = sphi %s189, %s189
                %s205 = sphi %s184, %s184
              $region76: #{tpu_custom_call.1} parent=72 // loop_header_branch
                %202 = sbr.rel (%p200) target = $region80
              $region77: #{tpu_custom_call.1} parent=72 // loop_body
                %v206 = vld [vmem:[%s204] sm:%s197]
                %207 = vst [vmem:[%s205] sm:%s197] %v206
                %v208 = vld [vmem:[%s204 + $0x10] sm:%s197]
                %209 = vst [vmem:[%s205 + $0x4] sm:%s197] %v208
              $region78: #{tpu_custom_call.1} parent=72 // loop_footer
                %s203 = sadd.s32 1, %s199
              $region79: #{tpu_custom_call.1} parent=72 // loop_footer_branch
                %198 = sbr.rel target = $region75
              $region80: #{tpu_custom_call.1} parent=72 // loop_exit
                _
            $region73: #{tpu_custom_call.1} parent=64 // pred_fallthru
              _
          $region65: #{tpu_custom_call.1} parent=60 // pred_fallthru
            _
          %234 = vnop
        $region61: #{tpu_custom_call.1} parent=15 // pred_fallthru
          _
      $region16: #{tpu_custom_call.1} parent=5 // pred_fallthru
        _
      %p235 = scmp.le.s32.totalorder 1, %s8
      %p236 = scmp.lt.s32.totalorder %s8, 9
      %p237 = pnand %p235, %p236
      %p238 = pneg %p237
      // Predicated region
      $region99: #{tpu_custom_call.1} parent=5 // pred_check
        _
      $region100: #{tpu_custom_call.1} parent=5 // pred_check_branch
        %240 = sbr.rel (%p237) target = $region102
      $region101: #{tpu_custom_call.1} parent=5 // pred_region
        %s241 = ssub.s32 %s8, 1
        %s242 = sand.u32 %s35, 1
        %s243 = sand.u32 %s35, 1
        %s244 = smul.addr %s243, 8
        %s245 = scalar_lea.vmem [#allocation2], %s244
        // Predicated region
        $region103: #{tpu_custom_call.1} parent=101 // pred_check
          %p246 = pneg %p48
        $region104: #{tpu_custom_call.1} parent=101 // pred_check_branch
          %248 = sbr.rel (%p246) target = $region106
        $region105: #{tpu_custom_call.1} parent=101 // pred_region
          _
        $region106: #{tpu_custom_call.1} parent=101 // pred_fallthru
          _
        %s249 = sand.u32 %s63, 1
        %s250 = sand.u32 %s63, 1
        %s251 = smul.addr %s250, 8
        %s252 = scalar_lea.vmem [#allocation3], %s251
        // Predicated region
        $region107: #{tpu_custom_call.1} parent=101 // pred_check
          %p253 = pneg %p76
        $region108: #{tpu_custom_call.1} parent=101 // pred_check_branch
          %255 = sbr.rel (%p253) target = $region110
        $region109: #{tpu_custom_call.1} parent=101 // pred_region
          _
        $region110: #{tpu_custom_call.1} parent=101 // pred_fallthru
          _
        %s256 = sand.u32 %s35, 1
        %s257 = sand.u32 %s35, 1
        %s258 = smul.addr %s257, 8
        %s259 = scalar_lea.vmem [#allocation2], %s258
        %p260 = pneg %p48
        %p261 = pneg %p45
        %s262 = sand.u32 %s63, 1
        %s263 = sand.u32 %s63, 1
        %s264 = smul.addr %s263, 8
        %s265 = scalar_lea.vmem [#allocation3], %s264
        %p266 = pneg %p76
        %p267 = pneg %p73
        %p268 = pneg %p102
        %p269 = pneg %p99
        %s270 = smul.u32 2, %s17
        %p271 = scmp.lt.s32.totalorder %s270, 3
        %s272 = scalar_select %p271, %s270, 3
        %s273 = smul.addr %s272, 8
        %s274 = scalar_lea.vmem %s2, %s273
        %s275 = smul.u32 2, %s17
        %s276 = smul.u32 2, %s17
        %s277 = smul.u32 2, %s17
        %p278 = scmp.lt.s32.totalorder %s277, 3
        %s279 = scalar_select %p278, %s277, 3
        %s280 = smul.addr %s279, 8
        %s281 = scalar_lea.vmem %s2, %s280
        %s282 = smul.u32 2, %s17
        %p283 = scmp.eq.s32.totalorder %s18, 0
        // Predicated region
        $region111: #{tpu_custom_call.1} parent=101 // pred_check
          %p284 = pneg %p283
        $region112: #{tpu_custom_call.1} parent=101 // pred_check_branch
          %286 = sbr.rel (%p284) target = $region114
        $region113: #{tpu_custom_call.1} parent=101 // pred_region
          %vm287 = vcmask 55296
          %288 = vst.msk [vmem:[%s281] sm:$0x7f] %vm287, 0.0
          %289 = vst.msk [vmem:[%s281 + $0x8] sm:$0x7f] %vm287, 0.0
        $region114: #{tpu_custom_call.1} parent=101 // pred_fallthru
          _
        %v290 = vld [vmem:[%s252] sm:$0x7]
        %v291 = vld [vmem:[%s252 + $0x4] sm:$0x7]
        %v292 = vld [vmem:[%s245] sm:$0x7]
        %v293 = vld [vmem:[%s245 + $0x4] sm:$0x7]
        %v296 = vrot.slane %v292, 5
        %v297 = vrot.slane %v293, 5
        %vm300 = vcmask 1042432
        %v301 = vsel %vm300, %v290, %v296
        %v302 = vsel %vm300, %v291, %v297
        %vm303 = vcmask 1045504
        %v304 = vsel %vm303, %v301, 1.0
        %v305 = vsel %vm303, %v302, 1.0
        %v306 = vld [vmem:[%s281] sm:$0x7f]
        %v307 = vld [vmem:[%s281 + $0x8] sm:$0x7f]
        %308 = vmatpush.xpose.msra.mxu0 0.0
        %309 = vmatpush.xpose.msra.mxu0 0.0
        %310 = vmatpush.xpose.msra.mxu0 0.0
        %311 = vmatpush.xpose.msra.mxu0 0.0
        %312 = vmatpush.xpose.msra.mxu0 0.0
        %313 = vmatpush.xpose.msra.mxu0 0.0
        %314 = vmatpush.xpose.msra.mxu0 0.0
        %315 = vmatpush.xpose.msra.mxu0 0.0
        %316 = vmatpush.xpose.msra.mxu0 0.0
        %317 = vmatpush.xpose.msra.mxu0 0.0
        %318 = vmatpush.xpose.msra.mxu0 0.0
        %319 = vmatpush.xpose.msra.mxu0 0.0
        %320 = vmatpush.xpose.msra.mxu0 0.0
        %321 = vmatpush.xpose.msra.mxu0 0.0
        %322 = vmatpush.xpose.msra.mxu0 0.0
        %323 = vmatpush.xpose.msra.mxu0 %v304
        %324 = vmatmul.f32.gmra.mxu0 %v304
        %v325 = vpop.f32.mrf.mxu0
        %v326 = vadd.f32 0.0, %v325
        %327 = vdwg.mxu0
        %328 = vmatpush.xpose.msra.mxu0 0.0
        %329 = vmatpush.xpose.msra.mxu0 0.0
        %330 = vmatpush.xpose.msra.mxu0 0.0
        %331 = vmatpush.xpose.msra.mxu0 0.0
        %332 = vmatpush.xpose.msra.mxu0 0.0
        %333 = vmatpush.xpose.msra.mxu0 0.0
        %334 = vmatpush.xpose.msra.mxu0 0.0
        %335 = vmatpush.xpose.msra.mxu0 0.0
        %336 = vmatpush.xpose.msra.mxu0 0.0
        %337 = vmatpush.xpose.msra.mxu0 0.0
        %338 = vmatpush.xpose.msra.mxu0 0.0
        %339 = vmatpush.xpose.msra.mxu0 0.0
        %340 = vmatpush.xpose.msra.mxu0 0.0
        %341 = vmatpush.xpose.msra.mxu0 0.0
        %342 = vmatpush.xpose.msra.mxu0 0.0
        %343 = vmatpush.xpose.msra.mxu0 %v305
        %344 = vmatmul.f32.gmra.mxu0 %v305
        %v345 = vpop.f32.mrf.mxu0
        %v346 = vadd.f32 0.0, %v345
        %347 = vdwg.mxu0
        %v348 = vadd.f32 %v306, %v326
        %v349 = vadd.f32 %v307, %v346
        %vm350 = vcmask 55296
        %351 = vst.msk [vmem:[%s281] sm:$0x7f] %vm350, %v348
        %352 = vst.msk [vmem:[%s281 + $0x8] sm:$0x7f] %vm350, %v349
        %s353 = smul.u32 2, %s17
        %p354 = scmp.lt.s32.totalorder %s353, 3
        %s355 = scalar_select %p354, %s353, 3
        %s356 = smul.addr %s355, 8
        %s357 = scalar_lea.vmem %s2, %s356
        // Predicated region
        $region115: #{tpu_custom_call.1} parent=101 // pred_check
          %p358 = pneg %p99
        $region116: #{tpu_custom_call.1} parent=101 // pred_check_branch
          %360 = sbr.rel (%p358) target = $region118
        $region117: #{tpu_custom_call.1} parent=101 // pred_region
          %s361 = smul.u32 2, %s17
        $region118: #{tpu_custom_call.1} parent=101 // pred_fallthru
          _
      $region102: #{tpu_custom_call.1} parent=5 // pred_fallthru
        _
      %p362 = scmp.le.s32.totalorder 2, %s8
      // Predicated region
      $region119: #{tpu_custom_call.1} parent=5 // pred_check
        %p363 = pneg %p362
      $region120: #{tpu_custom_call.1} parent=5 // pred_check_branch
        %365 = sbr.rel (%p363) target = $region122
      $region121: #{tpu_custom_call.1} parent=5 // pred_region
        %s366 = ssub.s32 %s8, 2
        // Predicated region
        $region123: #{tpu_custom_call.1} parent=121 // pred_check
          %p367 = pneg %p105
        $region124: #{tpu_custom_call.1} parent=121 // pred_check_branch
          %369 = sbr.rel (%p367) target = $region126
        $region125: #{tpu_custom_call.1} parent=121 // pred_region
          %s370 = smul.u32 2, %s19
          %p371 = scmp.lt.s32.totalorder %s370, 3
          %s372 = scalar_select %p371, %s370, 3
          %s373 = smul.addr %s372, 8
          %s374 = scalar_lea.vmem %s2, %s373
        $region126: #{tpu_custom_call.1} parent=121 // pred_fallthru
          _
      $region122: #{tpu_custom_call.1} parent=5 // pred_fallthru
        _
    $region6: #{tpu_custom_call.1} parent=1 // loop_footer
      %s12 = sadd.s32 1, %s8
    $region7: #{tpu_custom_call.1} parent=1 // loop_footer_branch
      %7 = sbr.rel target = $region3
    $region8: #{tpu_custom_call.1} parent=1 // loop_exit
      _

</llo_original>
